<compile_context>
chip_gen: v6e
topology: v6e:2x2x1
jax: 0.10.0
libtpu: 0.0.40
codegen_flags: <defaults>
</compile_context>

<pallas_src>
import jax
import jax.numpy as jnp
from jax.experimental import pallas as pl
from jax.experimental.pallas import tpu as pltpu


def _round_up(x: int, m: int) -> int:
    return ((x + m - 1) // m) * m


def _mxu_pad(dim: int) -> int:
    # 256-wide tiles feed the 2x256^2 MXUs (v6e/v7x) when the dim is already
    # large; keep 128 for small dims (padding waste would dominate; also v5e).
    return _round_up(dim, 256 if dim >= 256 else 128)


def _mlp_kernel(x_ref, w1_ref, b1_ref, w2_ref, b2_ref, o_ref):
    # Layer 1 on the MXU: bf16 operands, f32 accumulation.
    x = x_ref[...].astype(w1_ref.dtype)
    h = jnp.dot(x, w1_ref[...], preferred_element_type=jnp.float32)
    # f32 bias add + numerically stable sigmoid (exp rides the EUP slot).
    h = jax.nn.sigmoid(h + b1_ref[...])
    # Shrink the (tb, hp) intermediate to bf16 before the second MXU pass.
    y = jnp.dot(h.astype(w2_ref.dtype), w2_ref[...],
                preferred_element_type=jnp.float32)
    o_ref[...] = (y + b2_ref[...]).astype(o_ref.dtype)


def prepare_params(w1, b1, w2, b2, *, compute_dtype=jnp.bfloat16):
    """One-time parameter prep (hoisted out of the forward pass).

    Args:
      w1: [input_size, hidden_size]   (transposed PyTorch weight)
      b1: [hidden_size]
      w2: [hidden_size, output_size]  (transposed PyTorch weight)
      b2: [output_size]
    Returns dict of padded, bf16-cast weights + f32 biases and the true out_size.
    Padded hidden columns hit zero rows of w2 (sigmoid(0)*0 contributes nothing)
    and padded output columns are sliced off in the forward — math stays exact.
    """
    in_size, hidden_size = w1.shape
    out_size = w2.shape[1]
    hp, op = _mxu_pad(hidden_size), _mxu_pad(out_size)

    w1p = jnp.zeros((in_size, hp), compute_dtype).at[:, :hidden_size].set(
        w1.astype(compute_dtype))
    b1p = jnp.zeros((1, hp), jnp.float32).at[0, :hidden_size].set(
        b1.astype(jnp.float32))
    w2p = jnp.zeros((hp, op), compute_dtype).at[:hidden_size, :out_size].set(
        w2.astype(compute_dtype))
    b2p = jnp.zeros((1, op), jnp.float32).at[0, :out_size].set(
        b2.astype(jnp.float32))
    return dict(w1=w1p, b1=b1p, w2=w2p, b2=b2p, out_size=out_size)


def rede_neural_forward(x, params, *, tile_b: int = 512,
                        vmem_budget_bytes: int = 44 << 20):
    """Fused Linear->Sigmoid->Linear forward, batch-tiled Pallas kernel.

    Args:
      x:      [B, input_size]
      params: output of prepare_params (padded weights resident across the grid)
      tile_b: max rows per grid step (auto-capped by the VMEM budget).
    Returns:
      [B, output_size] in x.dtype.
    """
    w1p, b1p, w2p, b2p = params["w1"], params["b1"], params["w2"], params["b2"]
    out_size = params["out_size"]
    B, in_size = x.shape
    hp = w1p.shape[1]
    op = w2p.shape[1]
    out_dtype = x.dtype

    x_bytes = jnp.dtype(x.dtype).itemsize
    w_bytes = jnp.dtype(w1p.dtype).itemsize
    o_bytes = jnp.dtype(out_dtype).itemsize

    # --- derive the batch tile from a per-core VMEM budget (v7x: 64 MiB) --------
    # resident operands (worst-case 2 buffers if single-buffering falls back),
    # double-buffered x/out streams, and the (tb, hp) f32+bf16 intermediate.
    fixed = 2 * ((in_size * hp + hp * op) * w_bytes + (hp + op) * 4)
    per_row = 2 * in_size * x_bytes + 2 * op * o_bytes + hp * (4 + w_bytes)
    tb_vmem = max((vmem_budget_bytes - fixed) // per_row, 8)
    tb_cap = max(8, (min(tile_b, int(tb_vmem)) // 8) * 8)

    # Even tile split bounds padding waste (<8 rows/tile); force >=2 grid steps
    # for non-tiny batches so both v7x TensorCores get work.
    n_tiles = max(-(-B // tb_cap), 2 if B >= 16 else 1)
    tb = _round_up(-(-B // n_tiles), 8)
    bp = n_tiles * tb
    grid = (n_tiles,)

    x_in = x if bp == B else jnp.zeros((bp, in_size), x.dtype).at[:B, :].set(x)

    flops = 2 * bp * (in_size * hp + hp * op)
    bytes_accessed = (bp * in_size * x_bytes
                      + (in_size * hp + hp * op) * w_bytes
                      + (hp + op) * 4
                      + bp * op * o_bytes)
    cost = pl.CostEstimate(flops=flops, transcendentals=bp * hp,
                           bytes_accessed=bytes_accessed)

    vmem_need = fixed + tb * per_row
    vmem_limit = int(min(max(int(1.5 * vmem_need), 16 << 20), 64 << 20))

    def _call(single_buffer: bool):
        def resident(shape):
            # Constant (0,0) index_map: operand never re-fetched across the grid.
            if single_buffer:
                return pl.BlockSpec(shape, lambda i: (0, 0),
                                    pipeline_mode=pl.Buffered(buffer_count=1))
            return pl.BlockSpec(shape, lambda i: (0, 0))

        return pl.pallas_call(
            _mlp_kernel,
            out_shape=jax.ShapeDtypeStruct((bp, op), out_dtype),
            grid_spec=pl.GridSpec(
                grid=grid,
                in_specs=[
                    pl.BlockSpec((tb, in_size), lambda i: (i, 0)),  # x: streamed
                    resident((in_size, hp)),                        # w1
                    resident((1, hp)),                              # b1 (f32)
                    resident((hp, op)),                             # w2
                    resident((1, op)),                              # b2 (f32)
                ],
                out_specs=pl.BlockSpec((tb, op), lambda i: (i, 0)),  # lane-dense
            ),
            compiler_params=pltpu.CompilerParams(
                dimension_semantics=("parallel",),
                vmem_limit_bytes=vmem_limit),
            cost_estimate=cost,
        )(x_in, w1p, b1p, w2p, b2p)

    try:
        out_padded = _call(True)
    except Exception:
        # pl.Buffered(1) single-buffering unavailable -> default double-buffering.
        out_padded = _call(False)

    return out_padded[:B, :out_size]


if __name__ == "__main__":
    # Shapes consistent with the module: Linear(32,64) -> Sigmoid -> Linear(64,16).
    input_size, hidden_size, output_size = 32, 64, 16
    batch = 8

    key = jax.random.PRNGKey(0)
    kx, kw1, kb1, kw2, kb2, kx2 = jax.random.split(key, 6)

    x = jax.random.normal(kx, (batch, input_size), dtype=jnp.float32)

    # Deterministic PyTorch-style uniform init (seed-fixed).
    bound1 = 1.0 / (input_size ** 0.5)
    w1 = jax.random.uniform(kw1, (input_size, hidden_size),
                            minval=-bound1, maxval=bound1, dtype=jnp.float32)
    b1 = jax.random.uniform(kb1, (hidden_size,),
                            minval=-bound1, maxval=bound1, dtype=jnp.float32)
    bound2 = 1.0 / (hidden_size ** 0.5)
    w2 = jax.random.uniform(kw2, (hidden_size, output_size),
                            minval=-bound2, maxval=bound2, dtype=jnp.float32)
    b2 = jax.random.uniform(kb2, (output_size,),
                            minval=-bound2, maxval=bound2, dtype=jnp.float32)

    # One-time weight prep (hoisted out of the per-call path).
    params = prepare_params(w1, b1, w2, b2)

    def _reference(xv):
        return jax.nn.sigmoid(xv @ w1 + b1) @ w2 + b2

    # 1) Tiny-batch check (single grid step).
    out = jax.block_until_ready(rede_neural_forward(x, params))
    ref = _reference(x)
    assert out.shape == (batch, output_size)
    # bf16 matmul operands (f32 accumulation) => ~1e-3-class error; loosen tol.
    assert jnp.allclose(out, ref, atol=2e-2, rtol=2e-2), "small-batch mismatch"

    # 2) Multi-tile check: exercises batch tiling, padding and resident weights.
    big_batch = 200
    x_big = jax.random.normal(kx2, (big_batch, input_size), dtype=jnp.float32)
    out_big = jax.block_until_ready(
        rede_neural_forward(x_big, params, tile_b=64))
    ref_big = _reference(x_big)
    assert out_big.shape == (big_batch, output_size)
    assert jnp.allclose(out_big, ref_big, atol=2e-2, rtol=2e-2), "tiled-batch mismatch"

    print("KERNEL_OK")
</pallas_src>

<mosaic_0001>
module attributes {stable_mosaic.version = 11 : i64} {
  func.func @_mlp_kernel(%arg0: i32, %arg1: memref<8x32xf32, #tpu.memory_space<vmem>>, %arg2: memref<32x128xbf16, #tpu.memory_space<vmem>>, %arg3: memref<1x128xf32, #tpu.memory_space<vmem>>, %arg4: memref<128x128xbf16, #tpu.memory_space<vmem>>, %arg5: memref<1x128xf32, #tpu.memory_space<vmem>>, %arg6: memref<8x128xf32, #tpu.memory_space<vmem>>) attributes {dimension_semantics = [#tpu.dimension_semantics<parallel>], iteration_bounds = array<i64: 1>, scalar_prefetch = 0 : i64, scratch_operands = 0 : i64, tpu.core_type = #tpu.core_type<tc>, window_params = [{transform_indices = @transform_0, window_bounds = array<i64: 8, 32>}, {pipeline_mode = #tpu.pipeline_mode<synchronous>, transform_indices = @transform_1, window_bounds = array<i64: 32, 128>}, {pipeline_mode = #tpu.pipeline_mode<synchronous>, transform_indices = @transform_2, window_bounds = array<i64: 1, 128>}, {pipeline_mode = #tpu.pipeline_mode<synchronous>, transform_indices = @transform_3, window_bounds = array<i64: 128, 128>}, {pipeline_mode = #tpu.pipeline_mode<synchronous>, transform_indices = @transform_4, window_bounds = array<i64: 1, 128>}, {transform_indices = @transform_5, window_bounds = array<i64: 8, 128>}]} {
    %c0 = arith.constant 0 : index
    %c0_0 = arith.constant 0 : index
    %0 = vector.load %arg1[%c0, %c0_0] : memref<8x32xf32, #tpu.memory_space<vmem>>, vector<8x32xf32>
    %1 = arith.truncf %0 : vector<8x32xf32> to vector<8x32xbf16>
    %c0_1 = arith.constant 0 : index
    %c0_2 = arith.constant 0 : index
    %2 = vector.load %arg2[%c0_1, %c0_2] : memref<32x128xbf16, #tpu.memory_space<vmem>>, vector<32x128xbf16>
    %cst = arith.constant dense<0.000000e+00> : vector<8x128xf32>
    %3 = tpu.matmul %1, %2, %cst {dimension_numbers = #tpu.dot_dimension_numbers<[1], [0], [0], [1], [0, 0, 1, 1], [], []>} : vector<8x32xbf16>, vector<32x128xbf16>, vector<8x128xf32> -> vector<8x128xf32>
    %c0_3 = arith.constant 0 : index
    %c0_4 = arith.constant 0 : index
    %4 = vector.load %arg3[%c0_3, %c0_4] : memref<1x128xf32, #tpu.memory_space<vmem>>, vector<1x128xf32>
    %5 = vector.broadcast %4 : vector<1x128xf32> to vector<8x128xf32>
    %6 = arith.addf %3, %5 : vector<8x128xf32>
    %7 = arith.negf %6 : vector<8x128xf32>
    %8 = math.exp %7 : vector<8x128xf32>
    %cst_5 = arith.constant 1.000000e+00 : f32
    %9 = vector.broadcast %cst_5 : f32 to vector<8x128xf32>
    %10 = arith.addf %9, %8 : vector<8x128xf32>
    %11 = arith.divf %9, %10 : vector<8x128xf32>
    %12 = arith.truncf %11 : vector<8x128xf32> to vector<8x128xbf16>
    %c0_6 = arith.constant 0 : index
    %c0_7 = arith.constant 0 : index
    %13 = vector.load %arg4[%c0_6, %c0_7] : memref<128x128xbf16, #tpu.memory_space<vmem>>, vector<128x128xbf16>
    %cst_8 = arith.constant dense<0.000000e+00> : vector<8x128xf32>
    %14 = tpu.matmul %12, %13, %cst_8 {dimension_numbers = #tpu.dot_dimension_numbers<[1], [0], [0], [1], [0, 0, 1, 1], [], []>} : vector<8x128xbf16>, vector<128x128xbf16>, vector<8x128xf32> -> vector<8x128xf32>
    %c0_9 = arith.constant 0 : index
    %c0_10 = arith.constant 0 : index
    %15 = vector.load %arg5[%c0_9, %c0_10] : memref<1x128xf32, #tpu.memory_space<vmem>>, vector<1x128xf32>
    %16 = vector.broadcast %15 : vector<1x128xf32> to vector<8x128xf32>
    %17 = arith.addf %14, %16 : vector<8x128xf32>
    %c0_11 = arith.constant 0 : index
    %c0_12 = arith.constant 0 : index
    %18 = vector.load %arg6[%c0_11, %c0_12] : memref<8x128xf32, #tpu.memory_space<vmem>>, vector<8x128xf32>
    tpu.vector_store %arg6[%c0_11, %c0_12], %17 {strides = array<i32>} : memref<8x128xf32, #tpu.memory_space<vmem>>, vector<8x128xf32>,
    return
  }
  func.func @transform_0(%arg0: i32) -> (i32, i32) {
    %c0_i32 = arith.constant 0 : i32
    %c0_i32_0 = arith.constant 0 : i32
    return %arg0, %c0_i32 : i32, i32
  }
  func.func @transform_1(%arg0: i32) -> (i32, i32) {
    %c0_i32 = arith.constant 0 : i32
    %c0_i32_0 = arith.constant 0 : i32
    %c0_i32_1 = arith.constant 0 : i32
    return %c0_i32, %c0_i32_0 : i32, i32
  }
  func.func @transform_2(%arg0: i32) -> (i32, i32) {
    %c0_i32 = arith.constant 0 : i32
    %c0_i32_0 = arith.constant 0 : i32
    %c0_i32_1 = arith.constant 0 : i32
    return %c0_i32, %c0_i32_0 : i32, i32
  }
  func.func @transform_3(%arg0: i32) -> (i32, i32) {
    %c0_i32 = arith.constant 0 : i32
    %c0_i32_0 = arith.constant 0 : i32
    %c0_i32_1 = arith.constant 0 : i32
    return %c0_i32, %c0_i32_0 : i32, i32
  }
  func.func @transform_4(%arg0: i32) -> (i32, i32) {
    %c0_i32 = arith.constant 0 : i32
    %c0_i32_0 = arith.constant 0 : i32
    %c0_i32_1 = arith.constant 0 : i32
    return %c0_i32, %c0_i32_0 : i32, i32
  }
  func.func @transform_5(%arg0: i32) -> (i32, i32) {
    %c0_i32 = arith.constant 0 : i32
    %c0_i32_0 = arith.constant 0 : i32
    return %arg0, %c0_i32 : i32, i32
  }
}

module attributes {stable_mosaic.version = 11 : i64} {
  func.func @_mlp_kernel(%arg0: i32, %arg1: memref<8x32xf32, #tpu.memory_space<vmem>>, %arg2: memref<32x128xbf16, #tpu.memory_space<vmem>>, %arg3: memref<1x128xf32, #tpu.memory_space<vmem>>, %arg4: memref<128x128xbf16, #tpu.memory_space<vmem>>, %arg5: memref<1x128xf32, #tpu.memory_space<vmem>>, %arg6: memref<8x128xf32, #tpu.memory_space<vmem>>) attributes {dimension_semantics = [#tpu.dimension_semantics<parallel>], iteration_bounds = array<i64: 1>, scalar_prefetch = 0 : i64, scratch_operands = 0 : i64, tpu.core_type = #tpu.core_type<tc>, window_params = [{transform_indices = @transform_0, window_bounds = array<i64: 8, 32>}, {pipeline_mode = #tpu.pipeline_mode<synchronous>, transform_indices = @transform_1, window_bounds = array<i64: 32, 128>}, {pipeline_mode = #tpu.pipeline_mode<synchronous>, transform_indices = @transform_2, window_bounds = array<i64: 1, 128>}, {pipeline_mode = #tpu.pipeline_mode<synchronous>, transform_indices = @transform_3, window_bounds = array<i64: 128, 128>}, {pipeline_mode = #tpu.pipeline_mode<synchronous>, transform_indices = @transform_4, window_bounds = array<i64: 1, 128>}, {transform_indices = @transform_5, window_bounds = array<i64: 8, 128>}]} {
    %c0 = arith.constant 0 : index
    %c0_0 = arith.constant 0 : index
    %0 = vector.load %arg1[%c0, %c0_0] : memref<8x32xf32, #tpu.memory_space<vmem>>, vector<8x32xf32>
    %1 = arith.truncf %0 : vector<8x32xf32> to vector<8x32xbf16>
    %c0_1 = arith.constant 0 : index
    %c0_2 = arith.constant 0 : index
    %2 = vector.load %arg2[%c0_1, %c0_2] : memref<32x128xbf16, #tpu.memory_space<vmem>>, vector<32x128xbf16>
    %cst = arith.constant dense<0.000000e+00> : vector<8x128xf32>
    %3 = tpu.matmul %1, %2, %cst {dimension_numbers = #tpu.dot_dimension_numbers<[1], [0], [0], [1], [0, 0, 1, 1], [], []>} : vector<8x32xbf16>, vector<32x128xbf16>, vector<8x128xf32> -> vector<8x128xf32>
    %c0_3 = arith.constant 0 : index
    %c0_4 = arith.constant 0 : index
    %4 = vector.load %arg3[%c0_3, %c0_4] : memref<1x128xf32, #tpu.memory_space<vmem>>, vector<1x128xf32>
    %5 = vector.broadcast %4 : vector<1x128xf32> to vector<8x128xf32>
    %6 = arith.addf %3, %5 : vector<8x128xf32>
    %7 = arith.negf %6 : vector<8x128xf32>
    %8 = math.exp %7 : vector<8x128xf32>
    %cst_5 = arith.constant 1.000000e+00 : f32
    %9 = vector.broadcast %cst_5 : f32 to vector<8x128xf32>
    %10 = arith.addf %9, %8 : vector<8x128xf32>
    %11 = arith.divf %9, %10 : vector<8x128xf32>
    %12 = arith.truncf %11 : vector<8x128xf32> to vector<8x128xbf16>
    %c0_6 = arith.constant 0 : index
    %c0_7 = arith.constant 0 : index
    %13 = vector.load %arg4[%c0_6, %c0_7] : memref<128x128xbf16, #tpu.memory_space<vmem>>, vector<128x128xbf16>
    %cst_8 = arith.constant dense<0.000000e+00> : vector<8x128xf32>
    %14 = tpu.matmul %12, %13, %cst_8 {dimension_numbers = #tpu.dot_dimension_numbers<[1], [0], [0], [1], [0, 0, 1, 1], [], []>} : vector<8x128xbf16>, vector<128x128xbf16>, vector<8x128xf32> -> vector<8x128xf32>
    %c0_9 = arith.constant 0 : index
    %c0_10 = arith.constant 0 : index
    %15 = vector.load %arg5[%c0_9, %c0_10] : memref<1x128xf32, #tpu.memory_space<vmem>>, vector<1x128xf32>
    %16 = vector.broadcast %15 : vector<1x128xf32> to vector<8x128xf32>
    %17 = arith.addf %14, %16 : vector<8x128xf32>
    %c0_11 = arith.constant 0 : index
    %c0_12 = arith.constant 0 : index
    %18 = vector.load %arg6[%c0_11, %c0_12] : memref<8x128xf32, #tpu.memory_space<vmem>>, vector<8x128xf32>
    tpu.vector_store %arg6[%c0_11, %c0_12], %17 {strides = array<i32>} : memref<8x128xf32, #tpu.memory_space<vmem>>, vector<8x128xf32>,
    return
  }
  func.func @transform_0(%arg0: i32) -> (i32, i32) {
    %c0_i32 = arith.constant 0 : i32
    %c0_i32_0 = arith.constant 0 : i32
    return %arg0, %c0_i32 : i32, i32
  }
  func.func @transform_1(%arg0: i32) -> (i32, i32) {
    %c0_i32 = arith.constant 0 : i32
    %c0_i32_0 = arith.constant 0 : i32
    %c0_i32_1 = arith.constant 0 : i32
    return %c0_i32, %c0_i32_0 : i32, i32
  }
  func.func @transform_2(%arg0: i32) -> (i32, i32) {
    %c0_i32 = arith.constant 0 : i32
    %c0_i32_0 = arith.constant 0 : i32
    %c0_i32_1 = arith.constant 0 : i32
    return %c0_i32, %c0_i32_0 : i32, i32
  }
  func.func @transform_3(%arg0: i32) -> (i32, i32) {
    %c0_i32 = arith.constant 0 : i32
    %c0_i32_0 = arith.constant 0 : i32
    %c0_i32_1 = arith.constant 0 : i32
    return %c0_i32, %c0_i32_0 : i32, i32
  }
  func.func @transform_4(%arg0: i32) -> (i32, i32) {
    %c0_i32 = arith.constant 0 : i32
    %c0_i32_0 = arith.constant 0 : i32
    %c0_i32_1 = arith.constant 0 : i32
    return %c0_i32, %c0_i32_0 : i32, i32
  }
  func.func @transform_5(%arg0: i32) -> (i32, i32) {
    %c0_i32 = arith.constant 0 : i32
    %c0_i32_0 = arith.constant 0 : i32
    return %arg0, %c0_i32 : i32, i32
  }
}

</mosaic_0001>

<llo_original>
// kernel: tpu_custom_call.1
$region0: #{tpu_custom_call.1}
  #allocation0 [shape = 'u32[]', space=smem, size = 0x4, offset = 0x4, fixed_abs, tag = 'smem constant byte address 0x4 - core index']
  #allocation1 [shape = 'u32[144,128]{1,0:T(1,128)}', space=vmem, size = 0x12000, scoped, tag = 'internal scratch']
  %s0 = inlined_call_operand.hbm [shape: f32[8,32], index: 0, kind: input, shape index: {}]
  %s1 = inlined_call_operand.hbm [shape: bf16[32,128], index: 1, kind: input, shape index: {}]
  %s2 = inlined_call_operand.vmem [shape: f32[1,128], index: 2, kind: input, shape index: {}]
  %s3 = inlined_call_operand.hbm [shape: bf16[128,128], index: 3, kind: input, shape index: {}]
  %s4 = inlined_call_operand.vmem [shape: f32[1,128], index: 4, kind: input, shape index: {}]
  %s5 = inlined_call_operand.hbm [shape: f32[8,128], index: 5, kind: output, shape index: {}]
  %s6 = sld [smem:[#allocation0]]
  $region42: #{tpu_custom_call.1} parent=0
    _
  %s8 = ssub.s32 1, %s6
  %s9 = scalar_select 0, %s8, %s6
  $region1: #{tpu_custom_call.1} parent=0
    #allocation2 [shape = 'u8[4096]{0}', space=vmem, size = 0x1000, scoped, tag = 'input window, operand 0, single buffered']
    #allocation3 [shape = 's32[1]{0}', space=sflag, size = 0x4, scoped, tag = 'scoped memory for tpu_custom_call.1']
    #allocation4 [shape = 's32[1]{0}', space=sflag, size = 0x4, scoped, tag = 'scoped memory for tpu_custom_call.1']
    #allocation5 [shape = 'u8[8192]{0}', space=vmem, size = 0x2000, scoped, tag = 'input window, operand 1, single buffered']
    #allocation6 [shape = 's32[1]{0}', space=sflag, size = 0x4, scoped, tag = 'scoped memory for tpu_custom_call.1']
    #allocation7 [shape = 'u8[32768]{0}', space=vmem, size = 0x8000, scoped, tag = 'input window, operand 3, single buffered']
    #allocation8 [shape = 'u8[4096]{0}', space=vmem, size = 0x1000, scoped, tag = 'output window, operand 0, single buffered']
    %10 = vsyncpa [#allocation3], 0
    %11 = vsyncpa [#allocation6], 0
    %12 = vsyncpa [#allocation4], 0
    // Predicated region
    $region2: #{tpu_custom_call.1} parent=1 // pred_check
      _
    $region3: #{tpu_custom_call.1} parent=1 // pred_check_branch
      %14 = sbr.rel (0) target = $region5
    $region4: #{tpu_custom_call.1} parent=1 // pred_region
      %s16 = ssub.s32 128, 128
      %17 = vsyncadd [#allocation3], %s16
      %s19 = sshll.u32 [#allocation2], 4
      %s20 = int_to_ptr.vmem [resolvable:$true] %s19
      %22 = dma.hbm_to_vmem [thread:$0]  %s0, 128, %s20, [#allocation3]
    $region5: #{tpu_custom_call.1} parent=1 // pred_fallthru
      _
    // Predicated region
    $region6: #{tpu_custom_call.1} parent=1 // pred_check
      _
    $region7: #{tpu_custom_call.1} parent=1 // pred_check_branch
      %24 = sbr.rel (0) target = $region9
    $region8: #{tpu_custom_call.1} parent=1 // pred_region
      %s26 = ssub.s32 256, 256
      %27 = vsyncadd [#allocation6], %s26
      %s28 = sshll.u32 [#allocation5], 4
      %s29 = int_to_ptr.vmem [resolvable:$true] %s28
      %34 = dma.hbm_to_vmem [thread:$0]  %s1, 256, %s29, [#allocation6], 64, 64, 4
    $region9: #{tpu_custom_call.1} parent=1 // pred_fallthru
      _
    // Predicated region
    $region10: #{tpu_custom_call.1} parent=1 // pred_check
      _
    $region11: #{tpu_custom_call.1} parent=1 // pred_check_branch
      %36 = sbr.rel (0) target = $region13
    $region12: #{tpu_custom_call.1} parent=1 // pred_region
      _
    $region13: #{tpu_custom_call.1} parent=1 // pred_fallthru
      _
    // Predicated region
    $region14: #{tpu_custom_call.1} parent=1 // pred_check
      _
    $region15: #{tpu_custom_call.1} parent=1 // pred_check_branch
      %38 = sbr.rel (0) target = $region17
    $region16: #{tpu_custom_call.1} parent=1 // pred_region
      %s40 = ssub.s32 1024, 1024
      %41 = vsyncadd [#allocation6], %s40
      %s42 = sshll.u32 [#allocation7], 4
      %s43 = int_to_ptr.vmem [resolvable:$true] %s42
      %48 = dma.hbm_to_vmem [thread:$0]  %s3, 1024, %s43, [#allocation6], 64, 64, 4
    $region17: #{tpu_custom_call.1} parent=1 // pred_fallthru
      _
    // Predicated region
    $region18: #{tpu_custom_call.1} parent=1 // pred_check
      _
    $region19: #{tpu_custom_call.1} parent=1 // pred_check_branch
      %50 = sbr.rel (0) target = $region21
    $region20: #{tpu_custom_call.1} parent=1 // pred_region
      _
    $region21: #{tpu_custom_call.1} parent=1 // pred_fallthru
      _
    // Predicated region
    $region22: #{tpu_custom_call.1} parent=1 // pred_check
      _
    $region23: #{tpu_custom_call.1} parent=1 // pred_check_branch
      %52 = sbr.rel (0) target = $region25
    $region24: #{tpu_custom_call.1} parent=1 // pred_region
      %53 = dma.done [#allocation3], 128
    $region25: #{tpu_custom_call.1} parent=1 // pred_fallthru
      _
    // Predicated region
    $region26: #{tpu_custom_call.1} parent=1 // pred_check
      _
    $region27: #{tpu_custom_call.1} parent=1 // pred_check_branch
      %55 = sbr.rel (0) target = $region29
    $region28: #{tpu_custom_call.1} parent=1 // pred_region
      %56 = dma.done [#allocation6], 256
    $region29: #{tpu_custom_call.1} parent=1 // pred_fallthru
      _
    // Predicated region
    $region30: #{tpu_custom_call.1} parent=1 // pred_check
      _
    $region31: #{tpu_custom_call.1} parent=1 // pred_check_branch
      %58 = sbr.rel (0) target = $region33
    $region32: #{tpu_custom_call.1} parent=1 // pred_region
      %59 = dma.done [#allocation6], 1024
    $region33: #{tpu_custom_call.1} parent=1 // pred_fallthru
      _
    %v61 = vld [vmem:[#allocation2] sm:$0xff]
    %v62 = vpack.c.bf16 %v61, %v61
    %v63 = vld [vmem:[#allocation5] sm:$0xf]
    %v64 = vld [vmem:[#allocation5 + $0x4] sm:$0xf]
    %v65 = vld [vmem:[#allocation5 + $0x8] sm:$0xf]
    %v66 = vld [vmem:[#allocation5 + $0xc] sm:$0xf]
    %v67 = vld [vmem:[%s2] sm:$0x1]
    %v69 = vlaneseq
    %v70 = vshrl.u32 %v69, 7
    %v71 = vsub.s32 0, %v70
    %v72 = vrot.slane %v67, %v71
    %v78 = vunpack.c.l.b16 %v63
    %v79 = vunpack.c.l.b16 %v64
    %v80 = vunpack.c.l.b16 %v65
    %v81 = vunpack.c.l.b16 %v66
    %v82 = vpack.c.b16 %v79, %v78
    %v83 = vpack.c.b16 %v81, %v80
    %vm86 = vcmask 261120
    %v88 = vsel %vm86, %v62, 0
    %90 = vmatprep.subr.bf16.mxu0 0
    %91 = vmatpush1.bf16.msra.mxu0 0
    %92 = vmatprep.subr.bf16.mxu0 0
    %93 = vmatpush1.bf16.msra.mxu0 0
    %94 = vmatprep.subr.bf16.mxu0 0
    %95 = vmatpush1.bf16.msra.mxu0 0
    %96 = vmatprep.subr.bf16.mxu0 0
    %97 = vmatpush1.bf16.msra.mxu0 0
    %98 = vmatprep.subr.bf16.mxu0 0
    %99 = vmatpush1.bf16.msra.mxu0 0
    %100 = vmatprep.subr.bf16.mxu0 0
    %101 = vmatpush1.bf16.msra.mxu0 0
    %102 = vmatprep.subr.bf16.mxu0 0
    %103 = vmatpush1.bf16.msra.mxu0 %v83
    %104 = vmatprep.subr.bf16.mxu0 0
    %105 = vmatpush1.bf16.msra.mxu0 %v82
    %106 = vmatprep.subr.bf16.mxu0 0
    %107 = vmatpush2.bf16.msra.mxu0 0
    %108 = vmatprep.subr.bf16.mxu0 0
    %109 = vmatpush2.bf16.msra.mxu0 0
    %110 = vmatprep.subr.bf16.mxu0 0
    %111 = vmatpush2.bf16.msra.mxu0 0
    %112 = vmatprep.subr.bf16.mxu0 0
    %113 = vmatpush2.bf16.msra.mxu0 0
    %114 = vmatprep.subr.bf16.mxu0 0
    %115 = vmatpush2.bf16.msra.mxu0 0
    %116 = vmatprep.subr.bf16.mxu0 0
    %117 = vmatpush2.bf16.msra.mxu0 0
    %118 = vmatprep.subr.bf16.mxu0 0
    %119 = vmatpush2.bf16.msra.mxu0 0
    %120 = vmatprep.subr.bf16.mxu0 0
    %121 = vmatpush2.bf16.msra.mxu0 0
    %122 = vmatprep.mubr.bf16.mxu0 0
    %123 = vmatmul.mubr.bf16.gmra.mxu0 %v88
    %v124 = vpop.f32.mrf.mxu0
    %v125 = vadd.f32 %v72, %v124
    %v126 = vpop.f32.mrf.mxu0
    %v127 = vpop.f32.mrf.mxu0
    %v128 = vpop.f32.mrf.mxu0
    %129 = vdwg.mxu0
    %v130 = vxor.u32 %v125, 2147483648
    %v131 = vmul.f32 %v130, 1.442695
    %v132 = vpow.pop %v131
    %v133 = vadd.f32 %v132, 1.0
    %v134 = vrcp.pop %v133
    %v135 = vmul.f32 1.0, %v134
    %v136 = vpack.c.bf16 %v135, %v135
    %v137 = vld [vmem:[#allocation7] sm:$0xf]
    %v138 = vld [vmem:[#allocation7 + $0x4] sm:$0xf]
    %v139 = vld [vmem:[#allocation7 + $0x8] sm:$0xf]
    %v140 = vld [vmem:[#allocation7 + $0xc] sm:$0xf]
    %v141 = vld [vmem:[#allocation7 + $0x10] sm:$0xf]
    %v142 = vld [vmem:[#allocation7 + $0x14] sm:$0xf]
    %v143 = vld [vmem:[#allocation7 + $0x18] sm:$0xf]
    %v144 = vld [vmem:[#allocation7 + $0x1c] sm:$0xf]
    %v145 = vld [vmem:[#allocation7 + $0x20] sm:$0xf]
    %v146 = vld [vmem:[#allocation7 + $0x24] sm:$0xf]
    %v147 = vld [vmem:[#allocation7 + $0x28] sm:$0xf]
    %v148 = vld [vmem:[#allocation7 + $0x2c] sm:$0xf]
    %v149 = vld [vmem:[#allocation7 + $0x30] sm:$0xf]
    %v150 = vld [vmem:[#allocation7 + $0x34] sm:$0xf]
    %v151 = vld [vmem:[#allocation7 + $0x38] sm:$0xf]
    %v152 = vld [vmem:[#allocation7 + $0x3c] sm:$0xf]
    %v153 = vld [vmem:[%s4] sm:$0x1]
    %v155 = vlaneseq
    %v156 = vshrl.u32 %v155, 7
    %v157 = vsub.s32 0, %v156
    %v158 = vrot.slane %v153, %v157
    %v176 = vunpack.c.l.b16 %v137
    %v177 = vunpack.c.l.b16 %v138
    %v178 = vunpack.c.l.b16 %v139
    %v179 = vunpack.c.l.b16 %v140
    %v180 = vunpack.c.l.b16 %v141
    %v181 = vunpack.c.l.b16 %v142
    %v182 = vunpack.c.l.b16 %v143
    %v183 = vunpack.c.l.b16 %v144
    %v184 = vunpack.c.l.b16 %v145
    %v185 = vunpack.c.l.b16 %v146
    %v186 = vunpack.c.l.b16 %v147
    %v187 = vunpack.c.l.b16 %v148
    %v188 = vunpack.c.l.b16 %v149
    %v189 = vunpack.c.l.b16 %v150
    %v190 = vunpack.c.l.b16 %v151
    %v191 = vunpack.c.l.b16 %v152
    %v192 = vpack.c.b16 %v177, %v176
    %v193 = vpack.c.b16 %v179, %v178
    %v194 = vpack.c.b16 %v181, %v180
    %v195 = vpack.c.b16 %v183, %v182
    %v196 = vpack.c.b16 %v185, %v184
    %v197 = vpack.c.b16 %v187, %v186
    %v198 = vpack.c.b16 %v189, %v188
    %v199 = vpack.c.b16 %v191, %v190
    %208 = vmatprep.subr.bf16.mxu0 0
    %209 = vmatpush1.bf16.msra.mxu0 %v199
    %210 = vmatprep.subr.bf16.mxu0 0
    %211 = vmatpush1.bf16.msra.mxu0 %v198
    %212 = vmatprep.subr.bf16.mxu0 0
    %213 = vmatpush1.bf16.msra.mxu0 %v197
    %214 = vmatprep.subr.bf16.mxu0 0
    %215 = vmatpush1.bf16.msra.mxu0 %v196
    %216 = vmatprep.subr.bf16.mxu0 0
    %217 = vmatpush1.bf16.msra.mxu0 %v195
    %218 = vmatprep.subr.bf16.mxu0 0
    %219 = vmatpush1.bf16.msra.mxu0 %v194
    %220 = vmatprep.subr.bf16.mxu0 0
    %221 = vmatpush1.bf16.msra.mxu0 %v193
    %222 = vmatprep.subr.bf16.mxu0 0
    %223 = vmatpush1.bf16.msra.mxu0 %v192
    %224 = vmatprep.subr.bf16.mxu0 0
    %225 = vmatpush2.bf16.msra.mxu0 0
    %226 = vmatprep.subr.bf16.mxu0 0
    %227 = vmatpush2.bf16.msra.mxu0 0
    %228 = vmatprep.subr.bf16.mxu0 0
    %229 = vmatpush2.bf16.msra.mxu0 0
    %230 = vmatprep.subr.bf16.mxu0 0
    %231 = vmatpush2.bf16.msra.mxu0 0
    %232 = vmatprep.subr.bf16.mxu0 0
    %233 = vmatpush2.bf16.msra.mxu0 0
    %234 = vmatprep.subr.bf16.mxu0 0
    %235 = vmatpush2.bf16.msra.mxu0 0
    %236 = vmatprep.subr.bf16.mxu0 0
    %237 = vmatpush2.bf16.msra.mxu0 0
    %238 = vmatprep.subr.bf16.mxu0 0
    %239 = vmatpush2.bf16.msra.mxu0 0
    %240 = vmatprep.mubr.bf16.mxu0 0
    %241 = vmatmul.mubr.bf16.gmra.mxu0 %v136
    %v242 = vpop.f32.mrf.mxu0
    %v243 = vadd.f32 %v158, %v242
    %v244 = vpop.f32.mrf.mxu0
    %v245 = vpop.f32.mrf.mxu0
    %v246 = vpop.f32.mrf.mxu0
    %247 = vdwg.mxu0
    %248 = vst [vmem:[#allocation8] sm:$0xff] %v243
    // Predicated region
    $region34: #{tpu_custom_call.1} parent=1 // pred_check
      _
    $region35: #{tpu_custom_call.1} parent=1 // pred_check_branch
      %250 = sbr.rel (0) target = $region37
    $region36: #{tpu_custom_call.1} parent=1 // pred_region
      %s252 = ssub.s32 128, 128
      %253 = vsyncadd [#allocation4], %s252
      %s255 = sshll.u32 [#allocation8], 4
      %s256 = int_to_ptr.vmem [resolvable:$true] %s255
      %258 = dma.vmem_to_hbm [thread:$0]  %s256, 128, %s5, [#allocation4]
    $region37: #{tpu_custom_call.1} parent=1 // pred_fallthru
      _
    // Predicated region
    $region38: #{tpu_custom_call.1} parent=1 // pred_check
      _
    $region39: #{tpu_custom_call.1} parent=1 // pred_check_branch
      %260 = sbr.rel (0) target = $region41
    $region40: #{tpu_custom_call.1} parent=1 // pred_region
      %261 = dma.done [#allocation4], 128
    $region41: #{tpu_custom_call.1} parent=1 // pred_fallthru
      _
    %262 = vsyncpa [#allocation3], 1
    %263 = vsyncpa [#allocation6], 1
    %264 = vsyncpa [#allocation4], 1

// kernel: tpu_custom_call.1
$region0: #{tpu_custom_call.1}
  #allocation0 [shape = 'u32[]', space=smem, size = 0x4, offset = 0x4, fixed_abs, tag = 'smem constant byte address 0x4 - core index']
  #allocation1 [shape = 'u32[144,128]{1,0:T(1,128)}', space=vmem, size = 0x12000, scoped, tag = 'internal scratch']
  %s0 = inlined_call_operand.hbm [shape: f32[8,32], index: 0, kind: input, shape index: {}]
  %s1 = inlined_call_operand.hbm [shape: bf16[32,128], index: 1, kind: input, shape index: {}]
  %s2 = inlined_call_operand.vmem [shape: f32[1,128], index: 2, kind: input, shape index: {}]
  %s3 = inlined_call_operand.hbm [shape: bf16[128,128], index: 3, kind: input, shape index: {}]
  %s4 = inlined_call_operand.vmem [shape: f32[1,128], index: 4, kind: input, shape index: {}]
  %s5 = inlined_call_operand.hbm [shape: f32[8,128], index: 5, kind: output, shape index: {}]
  %s6 = sld [smem:[#allocation0]]
  $region42: #{tpu_custom_call.1} parent=0
    _
  %s8 = ssub.s32 1, %s6
  %s9 = scalar_select 0, %s8, %s6
  $region1: #{tpu_custom_call.1} parent=0
    #allocation2 [shape = 'u8[4096]{0}', space=vmem, size = 0x1000, scoped, tag = 'input window, operand 0, single buffered']
    #allocation3 [shape = 's32[1]{0}', space=sflag, size = 0x4, scoped, tag = 'scoped memory for tpu_custom_call.1']
    #allocation4 [shape = 's32[1]{0}', space=sflag, size = 0x4, scoped, tag = 'scoped memory for tpu_custom_call.1']
    #allocation5 [shape = 'u8[8192]{0}', space=vmem, size = 0x2000, scoped, tag = 'input window, operand 1, single buffered']
    #allocation6 [shape = 's32[1]{0}', space=sflag, size = 0x4, scoped, tag = 'scoped memory for tpu_custom_call.1']
    #allocation7 [shape = 'u8[32768]{0}', space=vmem, size = 0x8000, scoped, tag = 'input window, operand 3, single buffered']
    #allocation8 [shape = 'u8[4096]{0}', space=vmem, size = 0x1000, scoped, tag = 'output window, operand 0, single buffered']
    %10 = vsyncpa [#allocation3], 0
    %11 = vsyncpa [#allocation6], 0
    %12 = vsyncpa [#allocation4], 0
    // Predicated region
    $region2: #{tpu_custom_call.1} parent=1 // pred_check
      _
    $region3: #{tpu_custom_call.1} parent=1 // pred_check_branch
      %14 = sbr.rel (0) target = $region5
    $region4: #{tpu_custom_call.1} parent=1 // pred_region
      %s16 = ssub.s32 128, 128
      %17 = vsyncadd [#allocation3], %s16
      %s19 = sshll.u32 [#allocation2], 4
      %s20 = int_to_ptr.vmem [resolvable:$true] %s19
      %22 = dma.hbm_to_vmem [thread:$0]  %s0, 128, %s20, [#allocation3]
    $region5: #{tpu_custom_call.1} parent=1 // pred_fallthru
      _
    // Predicated region
    $region6: #{tpu_custom_call.1} parent=1 // pred_check
      _
    $region7: #{tpu_custom_call.1} parent=1 // pred_check_branch
      %24 = sbr.rel (0) target = $region9
    $region8: #{tpu_custom_call.1} parent=1 // pred_region
      %s26 = ssub.s32 256, 256
      %27 = vsyncadd [#allocation6], %s26
      %s28 = sshll.u32 [#allocation5], 4
      %s29 = int_to_ptr.vmem [resolvable:$true] %s28
      %34 = dma.hbm_to_vmem [thread:$0]  %s1, 256, %s29, [#allocation6], 64, 64, 4
    $region9: #{tpu_custom_call.1} parent=1 // pred_fallthru
      _
    // Predicated region
    $region10: #{tpu_custom_call.1} parent=1 // pred_check
      _
    $region11: #{tpu_custom_call.1} parent=1 // pred_check_branch
      %36 = sbr.rel (0) target = $region13
    $region12: #{tpu_custom_call.1} parent=1 // pred_region
      _
    $region13: #{tpu_custom_call.1} parent=1 // pred_fallthru
      _
    // Predicated region
    $region14: #{tpu_custom_call.1} parent=1 // pred_check
      _
    $region15: #{tpu_custom_call.1} parent=1 // pred_check_branch
      %38 = sbr.rel (0) target = $region17
    $region16: #{tpu_custom_call.1} parent=1 // pred_region
      %s40 = ssub.s32 1024, 1024
      %41 = vsyncadd [#allocation6], %s40
      %s42 = sshll.u32 [#allocation7], 4
      %s43 = int_to_ptr.vmem [resolvable:$true] %s42
      %48 = dma.hbm_to_vmem [thread:$0]  %s3, 1024, %s43, [#allocation6], 64, 64, 4
    $region17: #{tpu_custom_call.1} parent=1 // pred_fallthru
      _
    // Predicated region
    $region18: #{tpu_custom_call.1} parent=1 // pred_check
      _
    $region19: #{tpu_custom_call.1} parent=1 // pred_check_branch
      %50 = sbr.rel (0) target = $region21
    $region20: #{tpu_custom_call.1} parent=1 // pred_region
      _
    $region21: #{tpu_custom_call.1} parent=1 // pred_fallthru
      _
    // Predicated region
    $region22: #{tpu_custom_call.1} parent=1 // pred_check
      _
    $region23: #{tpu_custom_call.1} parent=1 // pred_check_branch
      %52 = sbr.rel (0) target = $region25
    $region24: #{tpu_custom_call.1} parent=1 // pred_region
      %53 = dma.done [#allocation3], 128
    $region25: #{tpu_custom_call.1} parent=1 // pred_fallthru
      _
    // Predicated region
    $region26: #{tpu_custom_call.1} parent=1 // pred_check
      _
    $region27: #{tpu_custom_call.1} parent=1 // pred_check_branch
      %55 = sbr.rel (0) target = $region29
    $region28: #{tpu_custom_call.1} parent=1 // pred_region
      %56 = dma.done [#allocation6], 256
    $region29: #{tpu_custom_call.1} parent=1 // pred_fallthru
      _
    // Predicated region
    $region30: #{tpu_custom_call.1} parent=1 // pred_check
      _
    $region31: #{tpu_custom_call.1} parent=1 // pred_check_branch
      %58 = sbr.rel (0) target = $region33
    $region32: #{tpu_custom_call.1} parent=1 // pred_region
      %59 = dma.done [#allocation6], 1024
    $region33: #{tpu_custom_call.1} parent=1 // pred_fallthru
      _
    %v61 = vld [vmem:[#allocation2] sm:$0xff]
    %v62 = vpack.c.bf16 %v61, %v61
    %v63 = vld [vmem:[#allocation5] sm:$0xf]
    %v64 = vld [vmem:[#allocation5 + $0x4] sm:$0xf]
    %v65 = vld [vmem:[#allocation5 + $0x8] sm:$0xf]
    %v66 = vld [vmem:[#allocation5 + $0xc] sm:$0xf]
    %v67 = vld [vmem:[%s2] sm:$0x1]
    %v69 = vlaneseq
    %v70 = vshrl.u32 %v69, 7
    %v71 = vsub.s32 0, %v70
    %v72 = vrot.slane %v67, %v71
    %v78 = vunpack.c.l.b16 %v63
    %v79 = vunpack.c.l.b16 %v64
    %v80 = vunpack.c.l.b16 %v65
    %v81 = vunpack.c.l.b16 %v66
    %v82 = vpack.c.b16 %v79, %v78
    %v83 = vpack.c.b16 %v81, %v80
    %vm86 = vcmask 261120
    %v88 = vsel %vm86, %v62, 0
    %90 = vmatprep.subr.bf16.mxu0 0
    %91 = vmatpush1.bf16.msra.mxu0 0
    %92 = vmatprep.subr.bf16.mxu0 0
    %93 = vmatpush1.bf16.msra.mxu0 0
    %94 = vmatprep.subr.bf16.mxu0 0
    %95 = vmatpush1.bf16.msra.mxu0 0
    %96 = vmatprep.subr.bf16.mxu0 0
    %97 = vmatpush1.bf16.msra.mxu0 0
    %98 = vmatprep.subr.bf16.mxu0 0
    %99 = vmatpush1.bf16.msra.mxu0 0
    %100 = vmatprep.subr.bf16.mxu0 0
    %101 = vmatpush1.bf16.msra.mxu0 0
    %102 = vmatprep.subr.bf16.mxu0 0
    %103 = vmatpush1.bf16.msra.mxu0 %v83
    %104 = vmatprep.subr.bf16.mxu0 0
    %105 = vmatpush1.bf16.msra.mxu0 %v82
    %106 = vmatprep.subr.bf16.mxu0 0
    %107 = vmatpush2.bf16.msra.mxu0 0
    %108 = vmatprep.subr.bf16.mxu0 0
    %109 = vmatpush2.bf16.msra.mxu0 0
    %110 = vmatprep.subr.bf16.mxu0 0
    %111 = vmatpush2.bf16.msra.mxu0 0
    %112 = vmatprep.subr.bf16.mxu0 0
    %113 = vmatpush2.bf16.msra.mxu0 0
    %114 = vmatprep.subr.bf16.mxu0 0
    %115 = vmatpush2.bf16.msra.mxu0 0
    %116 = vmatprep.subr.bf16.mxu0 0
    %117 = vmatpush2.bf16.msra.mxu0 0
    %118 = vmatprep.subr.bf16.mxu0 0
    %119 = vmatpush2.bf16.msra.mxu0 0
    %120 = vmatprep.subr.bf16.mxu0 0
    %121 = vmatpush2.bf16.msra.mxu0 0
    %122 = vmatprep.mubr.bf16.mxu0 0
    %123 = vmatmul.mubr.bf16.gmra.mxu0 %v88
    %v124 = vpop.f32.mrf.mxu0
    %v125 = vadd.f32 %v72, %v124
    %v126 = vpop.f32.mrf.mxu0
    %v127 = vpop.f32.mrf.mxu0
    %v128 = vpop.f32.mrf.mxu0
    %129 = vdwg.mxu0
    %v130 = vxor.u32 %v125, 2147483648
    %v131 = vmul.f32 %v130, 1.442695
    %v132 = vpow.pop %v131
    %v133 = vadd.f32 %v132, 1.0
    %v134 = vrcp.pop %v133
    %v135 = vmul.f32 1.0, %v134
    %v136 = vpack.c.bf16 %v135, %v135
    %v137 = vld [vmem:[#allocation7] sm:$0xf]
    %v138 = vld [vmem:[#allocation7 + $0x4] sm:$0xf]
    %v139 = vld [vmem:[#allocation7 + $0x8] sm:$0xf]
    %v140 = vld [vmem:[#allocation7 + $0xc] sm:$0xf]
    %v141 = vld [vmem:[#allocation7 + $0x10] sm:$0xf]
    %v142 = vld [vmem:[#allocation7 + $0x14] sm:$0xf]
    %v143 = vld [vmem:[#allocation7 + $0x18] sm:$0xf]
    %v144 = vld [vmem:[#allocation7 + $0x1c] sm:$0xf]
    %v145 = vld [vmem:[#allocation7 + $0x20] sm:$0xf]
    %v146 = vld [vmem:[#allocation7 + $0x24] sm:$0xf]
    %v147 = vld [vmem:[#allocation7 + $0x28] sm:$0xf]
    %v148 = vld [vmem:[#allocation7 + $0x2c] sm:$0xf]
    %v149 = vld [vmem:[#allocation7 + $0x30] sm:$0xf]
    %v150 = vld [vmem:[#allocation7 + $0x34] sm:$0xf]
    %v151 = vld [vmem:[#allocation7 + $0x38] sm:$0xf]
    %v152 = vld [vmem:[#allocation7 + $0x3c] sm:$0xf]
    %v153 = vld [vmem:[%s4] sm:$0x1]
    %v155 = vlaneseq
    %v156 = vshrl.u32 %v155, 7
    %v157 = vsub.s32 0, %v156
    %v158 = vrot.slane %v153, %v157
    %v176 = vunpack.c.l.b16 %v137
    %v177 = vunpack.c.l.b16 %v138
    %v178 = vunpack.c.l.b16 %v139
    %v179 = vunpack.c.l.b16 %v140
    %v180 = vunpack.c.l.b16 %v141
    %v181 = vunpack.c.l.b16 %v142
    %v182 = vunpack.c.l.b16 %v143
    %v183 = vunpack.c.l.b16 %v144
    %v184 = vunpack.c.l.b16 %v145
    %v185 = vunpack.c.l.b16 %v146
    %v186 = vunpack.c.l.b16 %v147
    %v187 = vunpack.c.l.b16 %v148
    %v188 = vunpack.c.l.b16 %v149
    %v189 = vunpack.c.l.b16 %v150
    %v190 = vunpack.c.l.b16 %v151
    %v191 = vunpack.c.l.b16 %v152
    %v192 = vpack.c.b16 %v177, %v176
    %v193 = vpack.c.b16 %v179, %v178
    %v194 = vpack.c.b16 %v181, %v180
    %v195 = vpack.c.b16 %v183, %v182
    %v196 = vpack.c.b16 %v185, %v184
    %v197 = vpack.c.b16 %v187, %v186
    %v198 = vpack.c.b16 %v189, %v188
    %v199 = vpack.c.b16 %v191, %v190
    %208 = vmatprep.subr.bf16.mxu0 0
    %209 = vmatpush1.bf16.msra.mxu0 %v199
    %210 = vmatprep.subr.bf16.mxu0 0
    %211 = vmatpush1.bf16.msra.mxu0 %v198
    %212 = vmatprep.subr.bf16.mxu0 0
    %213 = vmatpush1.bf16.msra.mxu0 %v197
    %214 = vmatprep.subr.bf16.mxu0 0
    %215 = vmatpush1.bf16.msra.mxu0 %v196
    %216 = vmatprep.subr.bf16.mxu0 0
    %217 = vmatpush1.bf16.msra.mxu0 %v195
    %218 = vmatprep.subr.bf16.mxu0 0
    %219 = vmatpush1.bf16.msra.mxu0 %v194
    %220 = vmatprep.subr.bf16.mxu0 0
    %221 = vmatpush1.bf16.msra.mxu0 %v193
    %222 = vmatprep.subr.bf16.mxu0 0
    %223 = vmatpush1.bf16.msra.mxu0 %v192
    %224 = vmatprep.subr.bf16.mxu0 0
    %225 = vmatpush2.bf16.msra.mxu0 0
    %226 = vmatprep.subr.bf16.mxu0 0
    %227 = vmatpush2.bf16.msra.mxu0 0
    %228 = vmatprep.subr.bf16.mxu0 0
    %229 = vmatpush2.bf16.msra.mxu0 0
    %230 = vmatprep.subr.bf16.mxu0 0
    %231 = vmatpush2.bf16.msra.mxu0 0
    %232 = vmatprep.subr.bf16.mxu0 0
    %233 = vmatpush2.bf16.msra.mxu0 0
    %234 = vmatprep.subr.bf16.mxu0 0
    %235 = vmatpush2.bf16.msra.mxu0 0
    %236 = vmatprep.subr.bf16.mxu0 0
    %237 = vmatpush2.bf16.msra.mxu0 0
    %238 = vmatprep.subr.bf16.mxu0 0
    %239 = vmatpush2.bf16.msra.mxu0 0
    %240 = vmatprep.mubr.bf16.mxu0 0
    %241 = vmatmul.mubr.bf16.gmra.mxu0 %v136
    %v242 = vpop.f32.mrf.mxu0
    %v243 = vadd.f32 %v158, %v242
    %v244 = vpop.f32.mrf.mxu0
    %v245 = vpop.f32.mrf.mxu0
    %v246 = vpop.f32.mrf.mxu0
    %247 = vdwg.mxu0
    %248 = vst [vmem:[#allocation8] sm:$0xff] %v243
    // Predicated region
    $region34: #{tpu_custom_call.1} parent=1 // pred_check
      _
    $region35: #{tpu_custom_call.1} parent=1 // pred_check_branch
      %250 = sbr.rel (0) target = $region37
    $region36: #{tpu_custom_call.1} parent=1 // pred_region
      %s252 = ssub.s32 128, 128
      %253 = vsyncadd [#allocation4], %s252
      %s255 = sshll.u32 [#allocation8], 4
      %s256 = int_to_ptr.vmem [resolvable:$true] %s255
      %258 = dma.vmem_to_hbm [thread:$0]  %s256, 128, %s5, [#allocation4]
    $region37: #{tpu_custom_call.1} parent=1 // pred_fallthru
      _
    // Predicated region
    $region38: #{tpu_custom_call.1} parent=1 // pred_check
      _
    $region39: #{tpu_custom_call.1} parent=1 // pred_check_branch
      %260 = sbr.rel (0) target = $region41
    $region40: #{tpu_custom_call.1} parent=1 // pred_region
      %261 = dma.done [#allocation4], 128
    $region41: #{tpu_custom_call.1} parent=1 // pred_fallthru
      _
    %262 = vsyncpa [#allocation3], 1
    %263 = vsyncpa [#allocation6], 1
    %264 = vsyncpa [#allocation4], 1

</llo_original>
